<compile_context>
chip_gen: v7x
topology: tpu7x:2x2x1
jax: 0.10.0
libtpu: 0.0.40
codegen_flags: <defaults>
</compile_context>

<pallas_src>
import functools

import jax
import jax.numpy as jnp
from jax.experimental import pallas as pl
from jax.experimental.pallas import tpu as pltpu

D_IN = 10    # linear1 fan-in
D_HID = 10   # linear1 fan-out / linear2 fan-in
D_OUT = 10   # linear2 fan-out
FP = 128     # lane-padded width used only for the resident weights
_SUBLANE = 8


def _round_up(n, m):
    return ((n + m - 1) // m) * m


def _cdiv(a, b):
    return -(-a // b)


def _choose_tiling(B, block_b):
    """Balanced batch tiling: tile <= block_b, multiple of 8, >=2 tiles when
    the batch is big enough to split (megacore on v7x), minimal BP padding."""
    n_tiles = max(1, _cdiv(B, block_b))
    if n_tiles == 1 and B > 2 * _SUBLANE:
        n_tiles = 2
    TB = _round_up(_cdiv(B, n_tiles), _SUBLANE)
    n_tiles = _cdiv(B, TB)
    BP = n_tiles * TB
    return TB, BP, n_tiles


def layer_kernel(x_ref, w1_ref, b1_ref, w2_ref, b2_ref, o_ref):
    # x_ref: (TB, D_IN) streamed batch tile (unpadded lanes).
    # w1_ref: (D_IN, FP), b1_ref: (1, FP)  -- zero-padded cols 10..127.
    # w2_ref: (FP, D_OUT)                  -- zero-padded rows 10..127.
    # b2_ref: (1, D_OUT), o_ref: (TB, D_OUT).
    x = x_ref[...]

    # linear1 + relu + sigmoid.  Padded activation cols are relu(0)=0 then
    # sigmoid(0)=0.5; they are cancelled by the zero pad rows of W2 below.
    a = jnp.dot(x, w1_ref[...], preferred_element_type=jnp.float32) + b1_ref[...]
    a = jax.nn.sigmoid(jnp.maximum(a, 0.0))

    # linear2 (aligned K=128) + relu, written straight into the (TB, 10) block.
    b = jnp.dot(a, w2_ref[...], preferred_element_type=jnp.float32) + b2_ref[...]
    o_ref[...] = jnp.maximum(b, 0.0).astype(o_ref.dtype)


def _layer_ref(x, w1, b1, w2, b2):
    a = jax.nn.sigmoid(jnp.maximum(x @ w1 + b1.reshape(1, -1), 0.0))
    return jnp.maximum(a @ w2 + b2.reshape(1, -1), 0.0)


@functools.partial(jax.jit, static_argnames=("block_b", "min_pallas_rows"))
def layer_forward(x, w1, b1, w2, b2, *, block_b=2048, min_pallas_rows=4096):
    B, _ = x.shape
    f32 = jnp.float32

    # Small-batch fallback: launch + wrapper overhead dominates tiny batches,
    # plain fused XLA is strictly faster there.
    if B < min_pallas_rows:
        return _layer_ref(x.astype(f32), w1.astype(f32), b1.astype(f32),
                          w2.astype(f32), b2.astype(f32)).astype(x.dtype)

    TB, BP, n_tiles = _choose_tiling(B, block_b)

    # Streamed activations stay unpadded in the lane dim; only pad the batch
    # up to the tile grid (and skip even that when it already divides).
    xf = x.astype(f32)
    xp = xf if BP == B else jnp.zeros((BP, D_IN), f32).at[:B].set(xf)

    # One-time lane padding of the VMEM-resident weights/biases.
    w1p = jnp.zeros((D_IN, FP), f32).at[:, :D_HID].set(w1.astype(f32))
    b1p = jnp.zeros((1, FP), f32).at[:, :D_HID].set(b1.reshape(1, -1).astype(f32))
    w2p = jnp.zeros((FP, D_OUT), f32).at[:D_HID, :].set(w2.astype(f32))
    b2p = b2.reshape(1, -1).astype(f32)

    # VMEM budget derived from the tile (each (TB, <=128) f32 block occupies
    # TB*512 B once lane-tiled): x + out double-buffered + activation temp +
    # resident weights + slack.  Cap at 64 MiB so tiles stay portable to v7x.
    vmem_limit = int(min(64 * 1024 * 1024,
                         max(32 * 1024 * 1024, 8 * TB * 512 + (2 << 20))))

    cost = pl.CostEstimate(
        flops=2 * BP * (D_IN * FP + FP * D_OUT) + 4 * BP * FP,
        transcendentals=BP * FP,
        bytes_accessed=4 * (BP * D_IN + BP * D_OUT
                            + D_IN * FP + FP + FP * D_OUT + D_OUT),
    )

    out = pl.pallas_call(
        layer_kernel,
        out_shape=jax.ShapeDtypeStruct((BP, D_OUT), f32),
        grid=(n_tiles,),
        in_specs=[
            pl.BlockSpec((TB, D_IN), lambda i: (i, 0)),    # x: streamed, unpadded
            pl.BlockSpec((D_IN, FP), lambda i: (0, 0)),    # W1: resident
            pl.BlockSpec((1, FP), lambda i: (0, 0)),       # b1: resident
            pl.BlockSpec((FP, D_OUT), lambda i: (0, 0)),   # W2: resident
            pl.BlockSpec((1, D_OUT), lambda i: (0, 0)),    # b2: resident
        ],
        out_specs=pl.BlockSpec((TB, D_OUT), lambda i: (i, 0)),
        compiler_params=pltpu.CompilerParams(
            dimension_semantics=("parallel",),
            vmem_limit_bytes=vmem_limit,
        ),
        cost_estimate=cost,
    )(xp, w1p, b1p, w2p, b2p)

    out = out if BP == B else out[:B]
    return out.astype(x.dtype)


def init_params(key, fan_in=D_IN, fan_out=D_OUT):
    # Mirrors torch.nn.Linear default init: U(-1/sqrt(fan_in), 1/sqrt(fan_in)).
    k1, k2, k3, k4 = jax.random.split(key, 4)
    bound = 1.0 / jnp.sqrt(fan_in)
    w1 = jax.random.uniform(k1, (fan_in, fan_out), jnp.float32, -bound, bound)
    b1 = jax.random.uniform(k2, (1, fan_out), jnp.float32, -bound, bound)
    w2 = jax.random.uniform(k3, (fan_in, fan_out), jnp.float32, -bound, bound)
    b2 = jax.random.uniform(k4, (1, fan_out), jnp.float32, -bound, bound)
    return w1, b1, w2, b2


if __name__ == "__main__":
    key = jax.random.PRNGKey(0)
    kx, kp, kx2 = jax.random.split(key, 3)

    w1, b1, w2, b2 = init_params(kp)

    # Small batch consistent with the module (Linear(10,10)); force the Pallas
    # path (min_pallas_rows=0) so the kernel itself runs.
    x_small = jax.random.normal(kx, (8, D_IN), jnp.float32)
    out_small = layer_forward(x_small, w1, b1, w2, b2, min_pallas_rows=0)
    out_small = jax.block_until_ready(out_small)

    # Ragged multi-tile batch to exercise the grid / balanced-tiling path.
    x_big = jax.random.normal(kx2, (200, D_IN), jnp.float32)
    out_big = layer_forward(x_big, w1, b1, w2, b2, block_b=64, min_pallas_rows=0)
    out_big = jax.block_until_ready(out_big)

    ref_small = _layer_ref(x_small, w1, b1, w2, b2)
    ref_big = _layer_ref(x_big, w1, b1, w2, b2)
    assert out_small.shape == (8, D_OUT)
    assert out_big.shape == (200, D_OUT)
    assert jnp.allclose(out_small, ref_small, atol=1e-5), "mismatch (small batch)"
    assert jnp.allclose(out_big, ref_big, atol=1e-5), "mismatch (multi-tile batch)"

    print("KERNEL_OK")
</pallas_src>

<mosaic_0001>
module attributes {stable_mosaic.version = 11 : i64} {
  func.func @layer_kernel(%arg0: i32, %arg1: memref<8x10xf32, #tpu.memory_space<vmem>>, %arg2: memref<10x128xf32, #tpu.memory_space<vmem>>, %arg3: memref<1x128xf32, #tpu.memory_space<vmem>>, %arg4: memref<128x10xf32, #tpu.memory_space<vmem>>, %arg5: memref<1x10xf32, #tpu.memory_space<vmem>>, %arg6: memref<8x10xf32, #tpu.memory_space<vmem>>) attributes {dimension_semantics = [#tpu.dimension_semantics<parallel>], iteration_bounds = array<i64: 1>, scalar_prefetch = 0 : i64, scratch_operands = 0 : i64, tpu.core_type = #tpu.core_type<tc>, window_params = [{transform_indices = @transform_0, window_bounds = array<i64: 8, 10>}, {pipeline_mode = #tpu.pipeline_mode<synchronous>, transform_indices = @transform_1, window_bounds = array<i64: 10, 128>}, {pipeline_mode = #tpu.pipeline_mode<synchronous>, transform_indices = @transform_2, window_bounds = array<i64: 1, 128>}, {pipeline_mode = #tpu.pipeline_mode<synchronous>, transform_indices = @transform_3, window_bounds = array<i64: 128, 10>}, {pipeline_mode = #tpu.pipeline_mode<synchronous>, transform_indices = @transform_4, window_bounds = array<i64: 1, 10>}, {transform_indices = @transform_5, window_bounds = array<i64: 8, 10>}]} {
    %c0 = arith.constant 0 : index
    %c0_0 = arith.constant 0 : index
    %0 = vector.load %arg1[%c0, %c0_0] : memref<8x10xf32, #tpu.memory_space<vmem>>, vector<8x10xf32>
    %c0_1 = arith.constant 0 : index
    %c0_2 = arith.constant 0 : index
    %1 = vector.load %arg2[%c0_1, %c0_2] : memref<10x128xf32, #tpu.memory_space<vmem>>, vector<10x128xf32>
    %cst = arith.constant dense<0.000000e+00> : vector<8x128xf32>
    %2 = tpu.matmul %0, %1, %cst {dimension_numbers = #tpu.dot_dimension_numbers<[1], [0], [0], [1], [0, 0, 1, 1], [], []>} : vector<8x10xf32>, vector<10x128xf32>, vector<8x128xf32> -> vector<8x128xf32>
    %c0_3 = arith.constant 0 : index
    %c0_4 = arith.constant 0 : index
    %3 = vector.load %arg3[%c0_3, %c0_4] : memref<1x128xf32, #tpu.memory_space<vmem>>, vector<1x128xf32>
    %4 = vector.broadcast %3 : vector<1x128xf32> to vector<8x128xf32>
    %5 = arith.addf %2, %4 : vector<8x128xf32>
    %cst_5 = arith.constant 0.000000e+00 : f32
    %6 = vector.broadcast %cst_5 : f32 to vector<8x128xf32>
    %7 = arith.maximumf %5, %6 : vector<8x128xf32>
    %8 = arith.negf %7 : vector<8x128xf32>
    %9 = math.exp %8 : vector<8x128xf32>
    %cst_6 = arith.constant 1.000000e+00 : f32
    %10 = vector.broadcast %cst_6 : f32 to vector<8x128xf32>
    %11 = arith.addf %10, %9 : vector<8x128xf32>
    %12 = arith.divf %10, %11 : vector<8x128xf32>
    %c0_7 = arith.constant 0 : index
    %c0_8 = arith.constant 0 : index
    %13 = vector.load %arg4[%c0_7, %c0_8] : memref<128x10xf32, #tpu.memory_space<vmem>>, vector<128x10xf32>
    %cst_9 = arith.constant dense<0.000000e+00> : vector<8x10xf32>
    %14 = tpu.matmul %12, %13, %cst_9 {dimension_numbers = #tpu.dot_dimension_numbers<[1], [0], [0], [1], [0, 0, 1, 1], [], []>} : vector<8x128xf32>, vector<128x10xf32>, vector<8x10xf32> -> vector<8x10xf32>
    %c0_10 = arith.constant 0 : index
    %c0_11 = arith.constant 0 : index
    %15 = vector.load %arg5[%c0_10, %c0_11] : memref<1x10xf32, #tpu.memory_space<vmem>>, vector<1x10xf32>
    %16 = vector.broadcast %15 : vector<1x10xf32> to vector<8x10xf32>
    %17 = arith.addf %14, %16 : vector<8x10xf32>
    %cst_12 = arith.constant 0.000000e+00 : f32
    %18 = vector.broadcast %cst_12 : f32 to vector<8x10xf32>
    %19 = arith.maximumf %17, %18 : vector<8x10xf32>
    %c0_13 = arith.constant 0 : index
    %c0_14 = arith.constant 0 : index
    %20 = vector.load %arg6[%c0_13, %c0_14] : memref<8x10xf32, #tpu.memory_space<vmem>>, vector<8x10xf32>
    tpu.vector_store %arg6[%c0_13, %c0_14], %19 {strides = array<i32>} : memref<8x10xf32, #tpu.memory_space<vmem>>, vector<8x10xf32>,
    return
  }
  func.func @transform_0(%arg0: i32) -> (i32, i32) {
    %c0_i32 = arith.constant 0 : i32
    %c0_i32_0 = arith.constant 0 : i32
    return %arg0, %c0_i32 : i32, i32
  }
  func.func @transform_1(%arg0: i32) -> (i32, i32) {
    %c0_i32 = arith.constant 0 : i32
    %c0_i32_0 = arith.constant 0 : i32
    %c0_i32_1 = arith.constant 0 : i32
    return %c0_i32, %c0_i32_0 : i32, i32
  }
  func.func @transform_2(%arg0: i32) -> (i32, i32) {
    %c0_i32 = arith.constant 0 : i32
    %c0_i32_0 = arith.constant 0 : i32
    %c0_i32_1 = arith.constant 0 : i32
    return %c0_i32, %c0_i32_0 : i32, i32
  }
  func.func @transform_3(%arg0: i32) -> (i32, i32) {
    %c0_i32 = arith.constant 0 : i32
    %c0_i32_0 = arith.constant 0 : i32
    %c0_i32_1 = arith.constant 0 : i32
    return %c0_i32, %c0_i32_0 : i32, i32
  }
  func.func @transform_4(%arg0: i32) -> (i32, i32) {
    %c0_i32 = arith.constant 0 : i32
    %c0_i32_0 = arith.constant 0 : i32
    %c0_i32_1 = arith.constant 0 : i32
    return %c0_i32, %c0_i32_0 : i32, i32
  }
  func.func @transform_5(%arg0: i32) -> (i32, i32) {
    %c0_i32 = arith.constant 0 : i32
    %c0_i32_0 = arith.constant 0 : i32
    return %arg0, %c0_i32 : i32, i32
  }
}

</mosaic_0001>

<llo_original>
// kernel: layer_forward.1
$region0: #{layer_forward.1}
  #allocation0 [shape = 'u32[]', space=smem, size = 0x4, offset = 0x4, fixed_abs, tag = 'smem constant byte address 0x4 - core index']
  #allocation1 [shape = 'u32[144,128]{1,0:T(1,128)}', space=vmem, size = 0x12000, scoped, tag = 'internal scratch']
  %s0 = inlined_call_operand.vmem [shape: f32[8,10], index: 0, kind: input, shape index: {}]
  %s1 = inlined_call_operand.vmem [shape: f32[10,128], index: 1, kind: input, shape index: {}]
  %s2 = inlined_call_operand.vmem [shape: f32[1,128], index: 2, kind: input, shape index: {}]
  %s3 = inlined_call_operand.vmem [shape: f32[128,10], index: 3, kind: input, shape index: {}]
  %s4 = inlined_call_operand.vmem [shape: f32[1,10], index: 4, kind: input, shape index: {}]
  %s5 = inlined_call_operand.hbm [shape: f32[8,10], index: 5, kind: output, shape index: {}]
  %s6 = sld [smem:[#allocation0]]
  $region30: #{layer_forward.1} parent=0
    _
  %s8 = ssub.s32 1, %s6
  %s9 = scalar_select 0, %s8, %s6
  $region1: #{layer_forward.1} parent=0
    #allocation2 [shape = 'u8[4096]{0}', space=vmem, size = 0x1000, scoped, tag = 'output window, operand 0, single buffered']
    #allocation3 [shape = 's32[1]{0}', space=sflag, size = 0x4, scoped, tag = 'scoped memory for layer_forward.1']
    %10 = vsyncpa [#allocation3], 0
    // Predicated region
    $region2: #{layer_forward.1} parent=1 // pred_check
      _
    $region3: #{layer_forward.1} parent=1 // pred_check_branch
      %12 = sbr.rel (0) target = $region5
    $region4: #{layer_forward.1} parent=1 // pred_region
      _
    $region5: #{layer_forward.1} parent=1 // pred_fallthru
      _
    // Predicated region
    $region6: #{layer_forward.1} parent=1 // pred_check
      _
    $region7: #{layer_forward.1} parent=1 // pred_check_branch
      %14 = sbr.rel (0) target = $region9
    $region8: #{layer_forward.1} parent=1 // pred_region
      _
    $region9: #{layer_forward.1} parent=1 // pred_fallthru
      _
    // Predicated region
    $region10: #{layer_forward.1} parent=1 // pred_check
      _
    $region11: #{layer_forward.1} parent=1 // pred_check_branch
      %16 = sbr.rel (0) target = $region13
    $region12: #{layer_forward.1} parent=1 // pred_region
      _
    $region13: #{layer_forward.1} parent=1 // pred_fallthru
      _
    // Predicated region
    $region14: #{layer_forward.1} parent=1 // pred_check
      _
    $region15: #{layer_forward.1} parent=1 // pred_check_branch
      %18 = sbr.rel (0) target = $region17
    $region16: #{layer_forward.1} parent=1 // pred_region
      _
    $region17: #{layer_forward.1} parent=1 // pred_fallthru
      _
    // Predicated region
    $region18: #{layer_forward.1} parent=1 // pred_check
      _
    $region19: #{layer_forward.1} parent=1 // pred_check_branch
      %20 = sbr.rel (0) target = $region21
    $region20: #{layer_forward.1} parent=1 // pred_region
      _
    $region21: #{layer_forward.1} parent=1 // pred_fallthru
      _
    %v21 = vld [vmem:[%s0] sm:$0xff]
    %v22 = vld [vmem:[%s1] sm:$0xff]
    %v23 = vld [vmem:[%s1 + $0x8] sm:$0x3]
    %v24 = vld [vmem:[%s2] sm:$0x1]
    %v26 = vlaneseq
    %v27 = vshrl.u32 %v26, 7
    %v28 = vsub.s32 0, %v27
    %v29 = vrot.slane %v24, %v28
    %vm31 = vcmask 80896
    %v33 = vsel %vm31, %v21, 0
    %vm35 = vcmask 1041408
    %v37 = vsel %vm35, %v23, 0
    %39 = vmatprep.subr.mxu0 0.0
    %40 = vmatpush1.msra.mxu0 %v22
    %41 = vmatprep.subr.mxu0 0.0
    %42 = vmatpush1.msra.mxu0 %v37
    %43 = vmatprep.subr.mxu0 0.0
    %44 = vmatpush1.msra.mxu0 0.0
    %45 = vmatprep.subr.mxu0 0.0
    %46 = vmatpush1.msra.mxu0 0.0
    %47 = vmatprep.subr.mxu0 0.0
    %48 = vmatpush1.msra.mxu0 0.0
    %49 = vmatprep.subr.mxu0 0.0
    %50 = vmatpush1.msra.mxu0 0.0
    %51 = vmatprep.subr.mxu0 0.0
    %52 = vmatpush1.msra.mxu0 0.0
    %53 = vmatprep.subr.mxu0 0.0
    %54 = vmatpush1.msra.mxu0 0.0
    %55 = vmatprep.subr.mxu0 0.0
    %56 = vmatpush1.msra.mxu0 0.0
    %57 = vmatprep.subr.mxu0 0.0
    %58 = vmatpush1.msra.mxu0 0.0
    %59 = vmatprep.subr.mxu0 0.0
    %60 = vmatpush1.msra.mxu0 0.0
    %61 = vmatprep.subr.mxu0 0.0
    %62 = vmatpush1.msra.mxu0 0.0
    %63 = vmatprep.subr.mxu0 0.0
    %64 = vmatpush1.msra.mxu0 0.0
    %65 = vmatprep.subr.mxu0 0.0
    %66 = vmatpush1.msra.mxu0 0.0
    %67 = vmatprep.subr.mxu0 0.0
    %68 = vmatpush1.msra.mxu0 0.0
    %69 = vmatprep.subr.mxu0 0.0
    %70 = vmatpush1.msra.mxu0 0.0
    %71 = vmatprep.subr.mxu0 0.0
    %72 = vmatpush1.msra.mxu0 0.0
    %73 = vmatprep.subr.mxu0 0.0
    %74 = vmatpush1.msra.mxu0 0.0
    %75 = vmatprep.subr.mxu0 0.0
    %76 = vmatpush1.msra.mxu0 0.0
    %77 = vmatprep.subr.mxu0 0.0
    %78 = vmatpush1.msra.mxu0 0.0
    %79 = vmatprep.subr.mxu0 0.0
    %80 = vmatpush1.msra.mxu0 0.0
    %81 = vmatprep.subr.mxu0 0.0
    %82 = vmatpush1.msra.mxu0 0.0
    %83 = vmatprep.subr.mxu0 0.0
    %84 = vmatpush1.msra.mxu0 0.0
    %85 = vmatprep.subr.mxu0 0.0
    %86 = vmatpush1.msra.mxu0 0.0
    %87 = vmatprep.subr.mxu0 0.0
    %88 = vmatpush1.msra.mxu0 0.0
    %89 = vmatprep.subr.mxu0 0.0
    %90 = vmatpush1.msra.mxu0 0.0
    %91 = vmatprep.subr.mxu0 0.0
    %92 = vmatpush1.msra.mxu0 0.0
    %93 = vmatprep.subr.mxu0 0.0
    %94 = vmatpush1.msra.mxu0 0.0
    %95 = vmatprep.subr.mxu0 0.0
    %96 = vmatpush1.msra.mxu0 0.0
    %97 = vmatprep.subr.mxu0 0.0
    %98 = vmatpush1.msra.mxu0 0.0
    %99 = vmatprep.subr.mxu0 0.0
    %100 = vmatpush1.msra.mxu0 0.0
    %101 = vmatprep.subr.mxu0 0.0
    %102 = vmatpush1.msra.mxu0 0.0
    %103 = vmatprep.mubr.f32.mxu0 0.0
    %104 = vmatmul.mubr.f32.gmra.mrb[0].mxu0 %v33
    %v105 = vpop.f32.mrb[0].mxu0
    %v106 = vadd.f32 %v29, %v105
    %v107 = vpop.f32.mrb[0].mxu0
    %108 = vdwg.mxu0
    %v109 = vmax.f32 %v106, 0.0
    %v110 = vxor.u32 %v109, 2147483648
    %v111 = vmul.f32 %v110, 1.442695
    %v112 = vpow.pop %v111
    %v113 = vadd.f32 %v112, 1.0
    %v114 = vrcp.pop %v113
    %v115 = vmul.f32 1.0, %v114
    %v116 = vld [vmem:[%s3] sm:$0xff]
    %v117 = vld [vmem:[%s3 + $0x8] sm:$0xff]
    %v118 = vld [vmem:[%s3 + $0x10] sm:$0xff]
    %v119 = vld [vmem:[%s3 + $0x18] sm:$0xff]
    %v120 = vld [vmem:[%s3 + $0x20] sm:$0xff]
    %v121 = vld [vmem:[%s3 + $0x28] sm:$0xff]
    %v122 = vld [vmem:[%s3 + $0x30] sm:$0xff]
    %v123 = vld [vmem:[%s3 + $0x38] sm:$0xff]
    %v124 = vld [vmem:[%s3 + $0x40] sm:$0xff]
    %v125 = vld [vmem:[%s3 + $0x48] sm:$0xff]
    %v126 = vld [vmem:[%s3 + $0x50] sm:$0xff]
    %v127 = vld [vmem:[%s3 + $0x58] sm:$0xff]
    %v128 = vld [vmem:[%s3 + $0x60] sm:$0xff]
    %v129 = vld [vmem:[%s3 + $0x68] sm:$0xff]
    %v130 = vld [vmem:[%s3 + $0x70] sm:$0xff]
    %v131 = vld [vmem:[%s3 + $0x78] sm:$0xff]
    %v132 = vld [vmem:[%s4] sm:$0x1]
    %v134 = vlaneseq
    %v135 = vshrl.u32 %v134, 7
    %v136 = vsub.s32 0, %v135
    %v137 = vrot.slane %v132, %v136
    %139 = vmatprep.subr.mxu0 0.0
    %140 = vmatpush1.msra.mxu0 %v116
    %141 = vmatprep.subr.mxu0 0.0
    %142 = vmatpush1.msra.mxu0 %v117
    %143 = vmatprep.subr.mxu0 0.0
    %144 = vmatpush1.msra.mxu0 %v118
    %145 = vmatprep.subr.mxu0 0.0
    %146 = vmatpush1.msra.mxu0 %v119
    %147 = vmatprep.subr.mxu0 0.0
    %148 = vmatpush1.msra.mxu0 %v120
    %149 = vmatprep.subr.mxu0 0.0
    %150 = vmatpush1.msra.mxu0 %v121
    %151 = vmatprep.subr.mxu0 0.0
    %152 = vmatpush1.msra.mxu0 %v122
    %153 = vmatprep.subr.mxu0 0.0
    %154 = vmatpush1.msra.mxu0 %v123
    %155 = vmatprep.subr.mxu0 0.0
    %156 = vmatpush1.msra.mxu0 %v124
    %157 = vmatprep.subr.mxu0 0.0
    %158 = vmatpush1.msra.mxu0 %v125
    %159 = vmatprep.subr.mxu0 0.0
    %160 = vmatpush1.msra.mxu0 %v126
    %161 = vmatprep.subr.mxu0 0.0
    %162 = vmatpush1.msra.mxu0 %v127
    %163 = vmatprep.subr.mxu0 0.0
    %164 = vmatpush1.msra.mxu0 %v128
    %165 = vmatprep.subr.mxu0 0.0
    %166 = vmatpush1.msra.mxu0 %v129
    %167 = vmatprep.subr.mxu0 0.0
    %168 = vmatpush1.msra.mxu0 %v130
    %169 = vmatprep.subr.mxu0 0.0
    %170 = vmatpush1.msra.mxu0 %v131
    %171 = vmatprep.subr.mxu0 0.0
    %172 = vmatpush1.msra.mxu0 0.0
    %173 = vmatprep.subr.mxu0 0.0
    %174 = vmatpush1.msra.mxu0 0.0
    %175 = vmatprep.subr.mxu0 0.0
    %176 = vmatpush1.msra.mxu0 0.0
    %177 = vmatprep.subr.mxu0 0.0
    %178 = vmatpush1.msra.mxu0 0.0
    %179 = vmatprep.subr.mxu0 0.0
    %180 = vmatpush1.msra.mxu0 0.0
    %181 = vmatprep.subr.mxu0 0.0
    %182 = vmatpush1.msra.mxu0 0.0
    %183 = vmatprep.subr.mxu0 0.0
    %184 = vmatpush1.msra.mxu0 0.0
    %185 = vmatprep.subr.mxu0 0.0
    %186 = vmatpush1.msra.mxu0 0.0
    %187 = vmatprep.subr.mxu0 0.0
    %188 = vmatpush1.msra.mxu0 0.0
    %189 = vmatprep.subr.mxu0 0.0
    %190 = vmatpush1.msra.mxu0 0.0
    %191 = vmatprep.subr.mxu0 0.0
    %192 = vmatpush1.msra.mxu0 0.0
    %193 = vmatprep.subr.mxu0 0.0
    %194 = vmatpush1.msra.mxu0 0.0
    %195 = vmatprep.subr.mxu0 0.0
    %196 = vmatpush1.msra.mxu0 0.0
    %197 = vmatprep.subr.mxu0 0.0
    %198 = vmatpush1.msra.mxu0 0.0
    %199 = vmatprep.subr.mxu0 0.0
    %200 = vmatpush1.msra.mxu0 0.0
    %201 = vmatprep.subr.mxu0 0.0
    %202 = vmatpush1.msra.mxu0 0.0
    %203 = vmatprep.mubr.f32.mxu0 0.0
    %204 = vmatmul.mubr.f32.gmra.mrb[0].mxu0 %v115
    %v205 = vpop.f32.mrb[0].mxu0
    %v206 = vadd.f32 %v137, %v205
    %v207 = vpop.f32.mrb[0].mxu0
    %208 = vdwg.mxu0
    %v209 = vmax.f32 %v206, 0.0
    %210 = vst.msk [vmem:[#allocation2] sm:$0xff] %vm31, %v209
    // Predicated region
    $region22: #{layer_forward.1} parent=1 // pred_check
      _
    $region23: #{layer_forward.1} parent=1 // pred_check_branch
      %212 = sbr.rel (0) target = $region25
    $region24: #{layer_forward.1} parent=1 // pred_region
      %s214 = ssub.s32 128, 128
      %215 = vsyncadd [#allocation3], %s214
      %s217 = sshll.u32 [#allocation2], 4
      %s218 = int_to_ptr.vmem [resolvable:$true] %s217
      %220 = dma.vmem_to_hbm [thread:$0]  %s218, 128, %s5, [#allocation3]
    $region25: #{layer_forward.1} parent=1 // pred_fallthru
      _
    // Predicated region
    $region26: #{layer_forward.1} parent=1 // pred_check
      _
    $region27: #{layer_forward.1} parent=1 // pred_check_branch
      %222 = sbr.rel (0) target = $region29
    $region28: #{layer_forward.1} parent=1 // pred_region
      %223 = dma.done [#allocation3], 128
    $region29: #{layer_forward.1} parent=1 // pred_fallthru
      _
    %224 = vsyncpa [#allocation3], 1

</llo_original>
